<compile_context>
chip_gen: v6e
topology: v6e:2x2x1
jax: 0.10.0
libtpu: 0.0.40
codegen_flags: <defaults>
</compile_context>

<pallas_src>
import functools
import math

import jax
import jax.numpy as jnp
from jax import lax
from jax.experimental import pallas as pl
from jax.experimental.pallas import tpu as pltpu


def _round_up(x, m):
    return ((x + m - 1) // m) * m


# ---------------------------------------------------------------------------
# Linear: y = x @ W^T + b   (W in PyTorch nn.Linear layout: (out, in))
# ---------------------------------------------------------------------------
def _linear_kernel(x_ref, w_ref, b_ref, o_ref):
    x = x_ref[...]                       # (tm, D)
    w = w_ref[...]                       # (tn, D)
    acc = lax.dot_general(x, w, (((1,), (1,)), ((), ())),
                          preferred_element_type=jnp.float32)
    o_ref[...] = (acc + b_ref[...]).astype(o_ref.dtype)


def _linear(x, w, b, *, tile_m=256, tile_n=512):
    M, D = x.shape
    N = w.shape[0]

    tm = min(tile_m, _round_up(M, 8))
    Mp = _round_up(M, tm)
    if Mp != M:
        x = jnp.pad(x, ((0, Mp - M), (0, 0)))

    # Tile the output (N) dimension if it divides cleanly; else keep full N.
    tn = tile_n if (N % tile_n == 0 and tile_n % 128 == 0) else N

    out = pl.pallas_call(
        _linear_kernel,
        out_shape=jax.ShapeDtypeStruct((Mp, N), x.dtype),
        grid_spec=pltpu.PrefetchScalarGridSpec(
            num_scalar_prefetch=0,
            grid=(Mp // tm, N // tn),
            in_specs=[
                pl.BlockSpec((tm, D), lambda i, j: (i, 0)),
                pl.BlockSpec((tn, D), lambda i, j: (j, 0)),
                pl.BlockSpec((1, tn), lambda i, j: (0, j)),
            ],
            out_specs=pl.BlockSpec((tm, tn), lambda i, j: (i, j)),
        ),
        compiler_params=pltpu.CompilerParams(
            dimension_semantics=("parallel", "parallel")),
    )(x, w, b.reshape(1, N))
    return out[:M]


# ---------------------------------------------------------------------------
# Per-(batch, head) scaled-dot-product attention, q-dimension tiled.
# ---------------------------------------------------------------------------
def _attention_kernel(q_ref, k_ref, v_ref, ctx_ref, attn_ref, *, scale):
    q = q_ref[0, 0] * scale                              # (tq, dh)
    k = k_ref[0, 0]                                      # (Lk, dh)
    v = v_ref[0, 0]                                      # (Lk, dh)

    scores = lax.dot_general(q, k, (((1,), (1,)), ((), ())),
                             preferred_element_type=jnp.float32)  # (tq, Lk)
    m = jnp.max(scores, axis=-1, keepdims=True)
    p = jnp.exp(scores - m)
    attn = p / jnp.sum(p, axis=-1, keepdims=True)

    ctx = jnp.dot(attn, v, preferred_element_type=jnp.float32)    # (tq, dh)
    ctx_ref[0, 0] = ctx.astype(ctx_ref.dtype)

    # Only head 0's attention is a module output; its block is resident across
    # the (arbitrary) head axis, so write it once on the first head iteration.
    @pl.when(pl.program_id(2) == 0)
    def _():
        attn_ref[0] = attn.astype(attn_ref.dtype)


def multi_headed_attention(key, value, query, params, head_count, *,
                           tile_m=256, tile_q=256, tile_n=512):
    """key/value: (B, Lk, D); query: (B, Lq, D). Returns (output, top_attn)."""
    B, Lk, D = key.shape
    Lq = query.shape[1]
    assert D % head_count == 0
    dh = D // head_count

    # Input projections (fused matmul+bias kernels).
    k_p = _linear(key.reshape(-1, D), params["w_k"], params["b_k"],
                  tile_m=tile_m, tile_n=tile_n)
    v_p = _linear(value.reshape(-1, D), params["w_v"], params["b_v"],
                  tile_m=tile_m, tile_n=tile_n)
    q_p = _linear(query.reshape(-1, D), params["w_q"], params["b_q"],
                  tile_m=tile_m, tile_n=tile_n)

    # shape(): (B, L, D) -> (B, H, L, dh)   (glue layout plumbing)
    k4 = k_p.reshape(B, Lk, head_count, dh).transpose(0, 2, 1, 3)
    v4 = v_p.reshape(B, Lk, head_count, dh).transpose(0, 2, 1, 3)
    q4 = q_p.reshape(B, Lq, head_count, dh).transpose(0, 2, 1, 3)

    tq = min(tile_q, _round_up(Lq, 8))
    Lqp = _round_up(Lq, tq)
    if Lqp != Lq:
        q4 = jnp.pad(q4, ((0, 0), (0, 0), (0, Lqp - Lq), (0, 0)))

    kernel = functools.partial(_attention_kernel, scale=1.0 / math.sqrt(dh))
    ctx, top_attn = pl.pallas_call(
        kernel,
        out_shape=(jax.ShapeDtypeStruct((B, head_count, Lqp, dh), q4.dtype),
                   jax.ShapeDtypeStruct((B, Lqp, Lk), jnp.float32)),
        grid_spec=pltpu.PrefetchScalarGridSpec(
            num_scalar_prefetch=0,
            grid=(B, Lqp // tq, head_count),
            in_specs=[
                pl.BlockSpec((1, 1, tq, dh), lambda b, qi, h: (b, h, qi, 0)),
                pl.BlockSpec((1, 1, Lk, dh), lambda b, qi, h: (b, h, 0, 0)),
                pl.BlockSpec((1, 1, Lk, dh), lambda b, qi, h: (b, h, 0, 0)),
            ],
            out_specs=[
                pl.BlockSpec((1, 1, tq, dh), lambda b, qi, h: (b, h, qi, 0)),
                pl.BlockSpec((1, tq, Lk), lambda b, qi, h: (b, qi, 0)),
            ],
        ),
        compiler_params=pltpu.CompilerParams(
            dimension_semantics=("parallel", "parallel", "arbitrary")),
    )(q4, k4, v4)

    # unshape(): (B, H, Lq, dh) -> (B, Lq, D), then final linear.
    context = ctx[:, :, :Lq, :].transpose(0, 2, 1, 3).reshape(B, Lq, D)
    out = _linear(context.reshape(-1, D), params["w_o"], params["b_o"],
                  tile_m=tile_m, tile_n=tile_n).reshape(B, Lq, D)
    return out, top_attn[:, :Lq, :]


# ---------------------------------------------------------------------------
# Pure-JAX reference mirroring the PyTorch forward (mask=None, eval dropout).
# ---------------------------------------------------------------------------
def _reference(key, value, query, params, head_count):
    B, Lk, D = key.shape
    Lq = query.shape[1]
    dh = D // head_count

    def lin(x, w, b):
        return x @ w.T + b

    def shape(x, L):
        return x.reshape(B, L, head_count, dh).transpose(0, 2, 1, 3)

    k = shape(lin(key, params["w_k"], params["b_k"]), Lk)
    v = shape(lin(value, params["w_v"], params["b_v"]), Lk)
    q = shape(lin(query, params["w_q"], params["b_q"]), Lq)
    q = q / math.sqrt(dh)
    scores = jnp.einsum("bhqd,bhkd->bhqk", q, k)
    attn = jax.nn.softmax(scores, axis=-1)
    ctx = jnp.einsum("bhqk,bhkd->bhqd", attn, v)
    ctx = ctx.transpose(0, 2, 1, 3).reshape(B, Lq, D)
    out = lin(ctx, params["w_o"], params["b_o"])
    return out, attn[:, 0]


if __name__ == "__main__":
    batch, seq, model_dim, head_count = 2, 8, 128, 4

    key0 = jax.random.PRNGKey(0)
    keys = jax.random.split(key0, 11)

    k_in = jax.random.normal(keys[0], (batch, seq, model_dim), jnp.float32)
    v_in = jax.random.normal(keys[1], (batch, seq, model_dim), jnp.float32)
    q_in = jax.random.normal(keys[2], (batch, seq, model_dim), jnp.float32)

    # PyTorch-style init: U(-1/sqrt(fan_in), 1/sqrt(fan_in))
    bound = 1.0 / math.sqrt(model_dim)

    def _w(k):
        return jax.random.uniform(k, (model_dim, model_dim), jnp.float32,
                                  -bound, bound)

    def _b(k):
        return jax.random.uniform(k, (model_dim,), jnp.float32, -bound, bound)

    params = {
        "w_k": _w(keys[3]), "b_k": _b(keys[4]),
        "w_v": _w(keys[5]), "b_v": _b(keys[6]),
        "w_q": _w(keys[7]), "b_q": _b(keys[8]),
        "w_o": _w(keys[9]), "b_o": _b(keys[10]),
    }

    out, top_attn = multi_headed_attention(k_in, v_in, q_in, params, head_count)
    out = jax.block_until_ready(out)
    top_attn = jax.block_until_ready(top_attn)

    ref_out, ref_attn = _reference(k_in, v_in, q_in, params, head_count)
    assert out.shape == ref_out.shape == (batch, seq, model_dim)
    assert top_attn.shape == ref_attn.shape == (batch, seq, seq)
    assert jnp.allclose(out, ref_out, atol=1e-4, rtol=1e-4), "output mismatch"
    assert jnp.allclose(top_attn, ref_attn, atol=1e-4, rtol=1e-4), "attn mismatch"

    print("KERNEL_OK")
</pallas_src>

<mosaic_0001>
module attributes {stable_mosaic.version = 11 : i64} {
  func.func @_linear_kernel(%arg0: i32, %arg1: i32, %arg2: memref<16x128xf32, #tpu.memory_space<vmem>>, %arg3: memref<128x128xf32, #tpu.memory_space<vmem>>, %arg4: memref<1x128xf32, #tpu.memory_space<vmem>>, %arg5: memref<16x128xf32, #tpu.memory_space<vmem>>) attributes {dimension_semantics = [#tpu.dimension_semantics<parallel>, #tpu.dimension_semantics<parallel>], iteration_bounds = array<i64: 1, 1>, scalar_prefetch = 0 : i64, scratch_operands = 0 : i64, tpu.core_type = #tpu.core_type<tc>, window_params = [{transform_indices = @transform_0, window_bounds = array<i64: 16, 128>}, {transform_indices = @transform_1, window_bounds = array<i64: 128, 128>}, {transform_indices = @transform_2, window_bounds = array<i64: 1, 128>}, {transform_indices = @transform_3, window_bounds = array<i64: 16, 128>}]} {
    %c0 = arith.constant 0 : index
    %c0_0 = arith.constant 0 : index
    %0 = vector.load %arg2[%c0, %c0_0] : memref<16x128xf32, #tpu.memory_space<vmem>>, vector<16x128xf32>
    %c0_1 = arith.constant 0 : index
    %c0_2 = arith.constant 0 : index
    %1 = vector.load %arg3[%c0_1, %c0_2] : memref<128x128xf32, #tpu.memory_space<vmem>>, vector<128x128xf32>
    %cst = arith.constant dense<0.000000e+00> : vector<16x128xf32>
    %2 = tpu.matmul %0, %1, %cst {dimension_numbers = #tpu.dot_dimension_numbers<[1], [1], [0], [0], [0, 0, 1, 0], [], []>} : vector<16x128xf32>, vector<128x128xf32>, vector<16x128xf32> -> vector<16x128xf32>
    %c0_3 = arith.constant 0 : index
    %c0_4 = arith.constant 0 : index
    %3 = vector.load %arg4[%c0_3, %c0_4] : memref<1x128xf32, #tpu.memory_space<vmem>>, vector<1x128xf32>
    %4 = vector.broadcast %3 : vector<1x128xf32> to vector<16x128xf32>
    %5 = arith.addf %2, %4 : vector<16x128xf32>
    %c0_5 = arith.constant 0 : index
    %c0_6 = arith.constant 0 : index
    %6 = vector.load %arg5[%c0_5, %c0_6] : memref<16x128xf32, #tpu.memory_space<vmem>>, vector<16x128xf32>
    tpu.vector_store %arg5[%c0_5, %c0_6], %5 {strides = array<i32>} : memref<16x128xf32, #tpu.memory_space<vmem>>, vector<16x128xf32>,
    return
  }
  func.func @transform_0(%arg0: i32, %arg1: i32) -> (i32, i32) {
    %c0_i32 = arith.constant 0 : i32
    %c0_i32_0 = arith.constant 0 : i32
    return %arg0, %c0_i32 : i32, i32
  }
  func.func @transform_1(%arg0: i32, %arg1: i32) -> (i32, i32) {
    %c0_i32 = arith.constant 0 : i32
    %c0_i32_0 = arith.constant 0 : i32
    return %arg1, %c0_i32 : i32, i32
  }
  func.func @transform_2(%arg0: i32, %arg1: i32) -> (i32, i32) {
    %c0_i32 = arith.constant 0 : i32
    %c0_i32_0 = arith.constant 0 : i32
    return %c0_i32, %arg1 : i32, i32
  }
  func.func @transform_3(%arg0: i32, %arg1: i32) -> (i32, i32) {
    %c0_i32 = arith.constant 0 : i32
    return %arg0, %arg1 : i32, i32
  }
}

</mosaic_0001>

<llo_original>
// kernel: tpu_custom_call.1
$region0: #{tpu_custom_call.1}
  #allocation0 [shape = 'u32[]', space=smem, size = 0x4, offset = 0x4, fixed_abs, tag = 'smem constant byte address 0x4 - core index']
  #allocation1 [shape = 'u32[144,128]{1,0:T(1,128)}', space=vmem, size = 0x12000, scoped, tag = 'internal scratch']
  %s0 = inlined_call_operand.hbm [shape: f32[16,128], index: 0, kind: input, shape index: {}]
  %s1 = inlined_call_operand.hbm [shape: f32[128,128], index: 1, kind: input, shape index: {}]
  %s2 = inlined_call_operand.vmem [shape: f32[1,128], index: 2, kind: input, shape index: {}]
  %s3 = inlined_call_operand.hbm [shape: f32[16,128], index: 3, kind: output, shape index: {}]
  %s4 = sld [smem:[#allocation0]]
  $region30: #{tpu_custom_call.1} parent=0
    _
  %s6 = ssub.s32 1, %s4
  %s7 = scalar_select 0, %s6, %s4
  $region1: #{tpu_custom_call.1} parent=0
    #allocation2 [shape = 'u8[8192]{0}', space=vmem, size = 0x2000, scoped, tag = 'input window, operand 0, single buffered']
    #allocation3 [shape = 's32[1]{0}', space=sflag, size = 0x4, scoped, tag = 'scoped memory for tpu_custom_call.1']
    #allocation4 [shape = 's32[1]{0}', space=sflag, size = 0x4, scoped, tag = 'scoped memory for tpu_custom_call.1']
    #allocation5 [shape = 'u8[65536]{0}', space=vmem, size = 0x10000, scoped, tag = 'input window, operand 1, single buffered']
    #allocation6 [shape = 's32[1]{0}', space=sflag, size = 0x4, scoped, tag = 'scoped memory for tpu_custom_call.1']
    #allocation7 [shape = 'u8[8192]{0}', space=vmem, size = 0x2000, scoped, tag = 'output window, operand 0, single buffered']
    %8 = vsyncpa [#allocation3], 0
    %9 = vsyncpa [#allocation6], 0
    %10 = vsyncpa [#allocation4], 0
    // Predicated region
    $region2: #{tpu_custom_call.1} parent=1 // pred_check
      _
    $region3: #{tpu_custom_call.1} parent=1 // pred_check_branch
      %12 = sbr.rel (0) target = $region5
    $region4: #{tpu_custom_call.1} parent=1 // pred_region
      %s14 = ssub.s32 256, 256
      %15 = vsyncadd [#allocation3], %s14
      %s16 = sshll.u32 [#allocation2], 4
      %s17 = int_to_ptr.vmem [resolvable:$true] %s16
      %22 = dma.hbm_to_vmem [thread:$0]  %s0, 256, %s17, [#allocation3], 128, 128, 8
    $region5: #{tpu_custom_call.1} parent=1 // pred_fallthru
      _
    // Predicated region
    $region6: #{tpu_custom_call.1} parent=1 // pred_check
      _
    $region7: #{tpu_custom_call.1} parent=1 // pred_check_branch
      %24 = sbr.rel (0) target = $region9
    $region8: #{tpu_custom_call.1} parent=1 // pred_region
      %s26 = ssub.s32 2048, 2048
      %27 = vsyncadd [#allocation6], %s26
      %s28 = sshll.u32 [#allocation5], 4
      %s29 = int_to_ptr.vmem [resolvable:$true] %s28
      %34 = dma.hbm_to_vmem [thread:$0]  %s1, 2048, %s29, [#allocation6], 128, 128, 8
    $region9: #{tpu_custom_call.1} parent=1 // pred_fallthru
      _
    // Predicated region
    $region10: #{tpu_custom_call.1} parent=1 // pred_check
      _
    $region11: #{tpu_custom_call.1} parent=1 // pred_check_branch
      %36 = sbr.rel (0) target = $region13
    $region12: #{tpu_custom_call.1} parent=1 // pred_region
      _
    $region13: #{tpu_custom_call.1} parent=1 // pred_fallthru
      _
    // Predicated region
    $region14: #{tpu_custom_call.1} parent=1 // pred_check
      _
    $region15: #{tpu_custom_call.1} parent=1 // pred_check_branch
      %38 = sbr.rel (0) target = $region17
    $region16: #{tpu_custom_call.1} parent=1 // pred_region
      %39 = dma.done [#allocation3], 256
    $region17: #{tpu_custom_call.1} parent=1 // pred_fallthru
      _
    // Predicated region
    $region18: #{tpu_custom_call.1} parent=1 // pred_check
      _
    $region19: #{tpu_custom_call.1} parent=1 // pred_check_branch
      %41 = sbr.rel (0) target = $region21
    $region20: #{tpu_custom_call.1} parent=1 // pred_region
      %42 = dma.done [#allocation6], 2048
    $region21: #{tpu_custom_call.1} parent=1 // pred_fallthru
      _
    %v43 = vld [vmem:[#allocation2] sm:$0xff]
    %v44 = vld [vmem:[#allocation2 + $0x8] sm:$0xff]
    %v45 = vld [vmem:[#allocation5] sm:$0xff]
    %v46 = vld [vmem:[#allocation5 + $0x8] sm:$0xff]
    %v47 = vld [vmem:[#allocation5 + $0x10] sm:$0xff]
    %v48 = vld [vmem:[#allocation5 + $0x18] sm:$0xff]
    %v49 = vld [vmem:[#allocation5 + $0x20] sm:$0xff]
    %v50 = vld [vmem:[#allocation5 + $0x28] sm:$0xff]
    %v51 = vld [vmem:[#allocation5 + $0x30] sm:$0xff]
    %v52 = vld [vmem:[#allocation5 + $0x38] sm:$0xff]
    %v53 = vld [vmem:[#allocation5 + $0x40] sm:$0xff]
    %v54 = vld [vmem:[#allocation5 + $0x48] sm:$0xff]
    %v55 = vld [vmem:[#allocation5 + $0x50] sm:$0xff]
    %v56 = vld [vmem:[#allocation5 + $0x58] sm:$0xff]
    %v57 = vld [vmem:[#allocation5 + $0x60] sm:$0xff]
    %v58 = vld [vmem:[#allocation5 + $0x68] sm:$0xff]
    %v59 = vld [vmem:[#allocation5 + $0x70] sm:$0xff]
    %v60 = vld [vmem:[#allocation5 + $0x78] sm:$0xff]
    %v61 = vld [vmem:[%s2] sm:$0x1]
    %v63 = vlaneseq
    %v64 = vshrl.u32 %v63, 7
    %v65 = vsub.s32 0, %v64
    %v66 = vrot.slane %v61, %v65
    %68 = vmatprep.subr.mxu0 0.0
    %69 = vmatpush1.xpose.msra.mxu0 %v60
    %70 = vmatprep.subr.mxu0 0.0
    %71 = vmatpush1.xpose.msra.mxu0 %v59
    %72 = vmatprep.subr.mxu0 0.0
    %73 = vmatpush1.xpose.msra.mxu0 %v58
    %74 = vmatprep.subr.mxu0 0.0
    %75 = vmatpush1.xpose.msra.mxu0 %v57
    %76 = vmatprep.subr.mxu0 0.0
    %77 = vmatpush1.xpose.msra.mxu0 %v56
    %78 = vmatprep.subr.mxu0 0.0
    %79 = vmatpush1.xpose.msra.mxu0 %v55
    %80 = vmatprep.subr.mxu0 0.0
    %81 = vmatpush1.xpose.msra.mxu0 %v54
    %82 = vmatprep.subr.mxu0 0.0
    %83 = vmatpush1.xpose.msra.mxu0 %v53
    %84 = vmatprep.subr.mxu0 0.0
    %85 = vmatpush1.xpose.msra.mxu0 %v52
    %86 = vmatprep.subr.mxu0 0.0
    %87 = vmatpush1.xpose.msra.mxu0 %v51
    %88 = vmatprep.subr.mxu0 0.0
    %89 = vmatpush1.xpose.msra.mxu0 %v50
    %90 = vmatprep.subr.mxu0 0.0
    %91 = vmatpush1.xpose.msra.mxu0 %v49
    %92 = vmatprep.subr.mxu0 0.0
    %93 = vmatpush1.xpose.msra.mxu0 %v48
    %94 = vmatprep.subr.mxu0 0.0
    %95 = vmatpush1.xpose.msra.mxu0 %v47
    %96 = vmatprep.subr.mxu0 0.0
    %97 = vmatpush1.xpose.msra.mxu0 %v46
    %98 = vmatprep.subr.mxu0 0.0
    %99 = vmatpush1.xpose.msra.mxu0 %v45
    %100 = vmatprep.subr.mxu0 0.0
    %101 = vmatpush2.xpose.msra.mxu0 0.0
    %102 = vmatprep.subr.mxu0 0.0
    %103 = vmatpush2.xpose.msra.mxu0 0.0
    %104 = vmatprep.subr.mxu0 0.0
    %105 = vmatpush2.xpose.msra.mxu0 0.0
    %106 = vmatprep.subr.mxu0 0.0
    %107 = vmatpush2.xpose.msra.mxu0 0.0
    %108 = vmatprep.subr.mxu0 0.0
    %109 = vmatpush2.xpose.msra.mxu0 0.0
    %110 = vmatprep.subr.mxu0 0.0
    %111 = vmatpush2.xpose.msra.mxu0 0.0
    %112 = vmatprep.subr.mxu0 0.0
    %113 = vmatpush2.xpose.msra.mxu0 0.0
    %114 = vmatprep.subr.mxu0 0.0
    %115 = vmatpush2.xpose.msra.mxu0 0.0
    %116 = vmatprep.subr.mxu0 0.0
    %117 = vmatpush2.xpose.msra.mxu0 0.0
    %118 = vmatprep.subr.mxu0 0.0
    %119 = vmatpush2.xpose.msra.mxu0 0.0
    %120 = vmatprep.subr.mxu0 0.0
    %121 = vmatpush2.xpose.msra.mxu0 0.0
    %122 = vmatprep.subr.mxu0 0.0
    %123 = vmatpush2.xpose.msra.mxu0 0.0
    %124 = vmatprep.subr.mxu0 0.0
    %125 = vmatpush2.xpose.msra.mxu0 0.0
    %126 = vmatprep.subr.mxu0 0.0
    %127 = vmatpush2.xpose.msra.mxu0 0.0
    %128 = vmatprep.subr.mxu0 0.0
    %129 = vmatpush2.xpose.msra.mxu0 0.0
    %130 = vmatprep.subr.mxu0 0.0
    %131 = vmatpush2.xpose.msra.mxu0 0.0
    %132 = vmatprep.mubr.f32.mxu0 0.0
    %133 = vmatmul.mubr.f32.gmra.mxu0 %v43
    %v134 = vpop.f32.mrf.mxu0
    %v135 = vadd.f32 %v66, %v134
    %v136 = vpop.f32.mrf.mxu0
    %137 = vmatprep.mubr.f32.mxu0 0.0
    %138 = vmatmul.mubr.f32.gmra.mxu0 %v44
    %v139 = vpop.f32.mrf.mxu0
    %v140 = vadd.f32 %v66, %v139
    %v141 = vpop.f32.mrf.mxu0
    %142 = vdwg.mxu0
    %143 = vst [vmem:[#allocation7] sm:$0xff] %v135
    %144 = vst [vmem:[#allocation7 + $0x8] sm:$0xff] %v140
    // Predicated region
    $region22: #{tpu_custom_call.1} parent=1 // pred_check
      _
    $region23: #{tpu_custom_call.1} parent=1 // pred_check_branch
      %146 = sbr.rel (0) target = $region25
    $region24: #{tpu_custom_call.1} parent=1 // pred_region
      %s148 = ssub.s32 256, 256
      %149 = vsyncadd [#allocation4], %s148
      %s150 = sshll.u32 [#allocation7], 4
      %s151 = int_to_ptr.vmem [resolvable:$true] %s150
      %156 = dma.vmem_to_hbm [thread:$0]  %s151, 256, %s3, [#allocation4], 128, 128, 8
    $region25: #{tpu_custom_call.1} parent=1 // pred_fallthru
      _
    // Predicated region
    $region26: #{tpu_custom_call.1} parent=1 // pred_check
      _
    $region27: #{tpu_custom_call.1} parent=1 // pred_check_branch
      %158 = sbr.rel (0) target = $region29
    $region28: #{tpu_custom_call.1} parent=1 // pred_region
      %159 = dma.done [#allocation4], 256
    $region29: #{tpu_custom_call.1} parent=1 // pred_fallthru
      _
    %160 = vsyncpa [#allocation3], 1
    %161 = vsyncpa [#allocation6], 1
    %162 = vsyncpa [#allocation4], 1

</llo_original>
